<compile_context>
chip_gen: v5e
topology: v5e:2x2
jax: 0.10.0
libtpu: 0.0.40
codegen_flags: <defaults>
</compile_context>

<pallas_src>
import jax
import jax.numpy as jnp
from jax.experimental import pallas as pl
from jax.experimental.pallas import tpu as pltpu

# ----------------------------------------------------------------------------
# Model dimensions (from LMClass.__init__) and synthetic "LM output" dims.
# ----------------------------------------------------------------------------
B = 8            # batch
S = 8            # sequence length (only token 0 / CLS is used by the head)
H = 768          # LM hidden size (pre_classifier in_features)
D1 = 512         # pre_classifier out_features
OUT = 1          # classifier out_features
DROP_PROB = 0.1  # stands in for float(sys.argv[4])


def _head_kernel(x_ref,      # [B, H]   CLS-token activations (bf16)
                 w1_ref,     # [H, D1]  pre_classifier weight (bf16, [in, out])
                 b1_ref,     # [1, D1]  pre_classifier bias   (f32)
                 w2_ref,     # [1, D1]  classifier weight row (f32)  (== w2.T)
                 b2_ref,     # [1, OUT] classifier bias       (f32)
                 mask_ref,   # [B, D1]  inverted-dropout mask, pre-scaled by 1/(1-p)
                 out_ref):   # [B, OUT]
    # pre_classifier: Linear(768 -> 512), f32 accumulation on the MXU.
    z = jnp.dot(x_ref[...], w1_ref[...],
                preferred_element_type=jnp.float32) + b1_ref[...]

    # ReLU
    z = jnp.maximum(z, 0.0)

    # Dropout (inverted-dropout mask precomputed host-side; identity when p == 0).
    z = z * mask_ref[...]

    # classifier: Linear(512 -> 1) as a VPU multiply + lane reduction
    # (a 1-column MXU matmul would waste the systolic array).
    out = jnp.sum(z * w2_ref[...], axis=-1, keepdims=True) + b2_ref[...]
    out_ref[...] = out.astype(out_ref.dtype)


def lm_head_forward(hidden_state, w1, b1, w2, b2, *,
                    dropout_key=None, drop_prob=DROP_PROB):
    """Pallas forward of the LMClass head.

    hidden_state: [B, S, H] float32 (the LM's last_hidden_state)
    w1: [H, D1], b1: [D1], w2: [D1, OUT=1], b2: [OUT=1]
    returns: [B, OUT] float32
    """
    b, s, h = hidden_state.shape
    d1 = w1.shape[1]
    out_dim = w2.shape[1]
    assert out_dim == 1, "classifier head is Linear(512 -> 1)"

    # CLS-token slice + dtype downcasts happen OUTSIDE the kernel (less HBM traffic).
    cls = hidden_state[:, 0, :].astype(jnp.bfloat16)        # [B, H]
    w1_bf16 = w1.astype(jnp.bfloat16)                       # [H, D1]
    b1_2d = b1.reshape(1, d1).astype(jnp.float32)           # [1, D1]
    w2_row = w2.reshape(1, d1).astype(jnp.float32)          # [1, D1] (== w2.T, OUT==1)
    b2_2d = b2.reshape(1, out_dim).astype(jnp.float32)      # [1, OUT]

    # Training-mode inverted dropout: mask precomputed with jax.random
    # (portable; the on-chip pltpu PRNG has no CPU-interpret lowering).
    if drop_prob > 0.0:
        if dropout_key is None:
            dropout_key = jax.random.PRNGKey(0)
        keep = jax.random.bernoulli(dropout_key, 1.0 - drop_prob, (b, d1))
        mask = keep.astype(jnp.float32) * (1.0 / (1.0 - drop_prob))
    else:
        mask = jnp.ones((b, d1), jnp.float32)

    grid_spec = pltpu.PrefetchScalarGridSpec(
        num_scalar_prefetch=0,
        grid=(1,),
        in_specs=[
            pl.BlockSpec((b, h), lambda i: (0, 0)),
            pl.BlockSpec((h, d1), lambda i: (0, 0)),
            pl.BlockSpec((1, d1), lambda i: (0, 0)),
            pl.BlockSpec((1, d1), lambda i: (0, 0)),
            pl.BlockSpec((1, out_dim), lambda i: (0, 0)),
            pl.BlockSpec((b, d1), lambda i: (0, 0)),
        ],
        out_specs=pl.BlockSpec((b, out_dim), lambda i: (0, 0)),
    )

    return pl.pallas_call(
        _head_kernel,
        grid_spec=grid_spec,
        out_shape=jax.ShapeDtypeStruct((b, out_dim), jnp.float32),
        compiler_params=pltpu.CompilerParams(
            dimension_semantics=("parallel",)),
    )(cls, w1_bf16, b1_2d, w2_row, b2_2d, mask)


def _init_linear(key, fan_in, fan_out):
    """Deterministic torch.nn.Linear-style init: U(-1/sqrt(fan_in), 1/sqrt(fan_in))."""
    kw, kb = jax.random.split(key)
    bound = 1.0 / jnp.sqrt(float(fan_in))
    w = jax.random.uniform(kw, (fan_in, fan_out), jnp.float32, -bound, bound)
    b = jax.random.uniform(kb, (fan_out,), jnp.float32, -bound, bound)
    return w, b


if __name__ == "__main__":
    key = jax.random.PRNGKey(0)
    k_h, k_l1, k_l2, k_drop = jax.random.split(key, 4)

    # Synthetic LM output (stands in for AutoModel(...)[0]).
    hidden_state = jax.random.normal(k_h, (B, S, H), dtype=jnp.float32)

    # pre_classifier: Linear(768, 512); classifier: Linear(512, 1)
    w1, b1 = _init_linear(k_l1, H, D1)
    w2, b2 = _init_linear(k_l2, D1, OUT)

    out = lm_head_forward(hidden_state, w1, b1, w2, b2,
                          dropout_key=k_drop, drop_prob=DROP_PROB)
    out = jax.block_until_ready(out)

    assert out.shape == (B, OUT), out.shape
    assert bool(jnp.all(jnp.isfinite(out))), "non-finite output"

    print("KERNEL_OK")
</pallas_src>

<mosaic_0001>
module attributes {stable_mosaic.version = 11 : i64} {
  func.func @_head_kernel(%arg0: i32, %arg1: memref<8x768xbf16, #tpu.memory_space<vmem>>, %arg2: memref<768x512xbf16, #tpu.memory_space<vmem>>, %arg3: memref<1x512xf32, #tpu.memory_space<vmem>>, %arg4: memref<1x512xf32, #tpu.memory_space<vmem>>, %arg5: memref<1x1xf32, #tpu.memory_space<vmem>>, %arg6: memref<8x512xf32, #tpu.memory_space<vmem>>, %arg7: memref<8x1xf32, #tpu.memory_space<vmem>>) attributes {dimension_semantics = [#tpu.dimension_semantics<parallel>], iteration_bounds = array<i64: 1>, scalar_prefetch = 0 : i64, scratch_operands = 0 : i64, tpu.core_type = #tpu.core_type<tc>, window_params = [{pipeline_mode = #tpu.pipeline_mode<synchronous>, transform_indices = @transform_0, window_bounds = array<i64: 8, 768>}, {pipeline_mode = #tpu.pipeline_mode<synchronous>, transform_indices = @transform_1, window_bounds = array<i64: 768, 512>}, {pipeline_mode = #tpu.pipeline_mode<synchronous>, transform_indices = @transform_2, window_bounds = array<i64: 1, 512>}, {pipeline_mode = #tpu.pipeline_mode<synchronous>, transform_indices = @transform_3, window_bounds = array<i64: 1, 512>}, {pipeline_mode = #tpu.pipeline_mode<synchronous>, transform_indices = @transform_4, window_bounds = array<i64: 1, 1>}, {pipeline_mode = #tpu.pipeline_mode<synchronous>, transform_indices = @transform_5, window_bounds = array<i64: 8, 512>}, {pipeline_mode = #tpu.pipeline_mode<synchronous>, transform_indices = @transform_6, window_bounds = array<i64: 8, 1>}]} {
    %c0 = arith.constant 0 : index
    %c0_0 = arith.constant 0 : index
    %0 = vector.load %arg1[%c0, %c0_0] : memref<8x768xbf16, #tpu.memory_space<vmem>>, vector<8x768xbf16>
    %c0_1 = arith.constant 0 : index
    %c0_2 = arith.constant 0 : index
    %1 = vector.load %arg2[%c0_1, %c0_2] : memref<768x512xbf16, #tpu.memory_space<vmem>>, vector<768x512xbf16>
    %cst = arith.constant dense<0.000000e+00> : vector<8x512xf32>
    %2 = tpu.matmul %0, %1, %cst {dimension_numbers = #tpu.dot_dimension_numbers<[1], [0], [0], [1], [0, 0, 1, 1], [], []>} : vector<8x768xbf16>, vector<768x512xbf16>, vector<8x512xf32> -> vector<8x512xf32>
    %c0_3 = arith.constant 0 : index
    %c0_4 = arith.constant 0 : index
    %3 = vector.load %arg3[%c0_3, %c0_4] : memref<1x512xf32, #tpu.memory_space<vmem>>, vector<1x512xf32>
    %4 = vector.broadcast %3 : vector<1x512xf32> to vector<8x512xf32>
    %5 = arith.addf %2, %4 : vector<8x512xf32>
    %cst_5 = arith.constant 0.000000e+00 : f32
    %6 = vector.broadcast %cst_5 : f32 to vector<8x512xf32>
    %7 = arith.maximumf %5, %6 : vector<8x512xf32>
    %c0_6 = arith.constant 0 : index
    %c0_7 = arith.constant 0 : index
    %8 = vector.load %arg6[%c0_6, %c0_7] : memref<8x512xf32, #tpu.memory_space<vmem>>, vector<8x512xf32>
    %9 = arith.mulf %7, %8 : vector<8x512xf32>
    %c0_8 = arith.constant 0 : index
    %c0_9 = arith.constant 0 : index
    %10 = vector.load %arg4[%c0_8, %c0_9] : memref<1x512xf32, #tpu.memory_space<vmem>>, vector<1x512xf32>
    %11 = vector.broadcast %10 : vector<1x512xf32> to vector<8x512xf32>
    %12 = arith.mulf %9, %11 : vector<8x512xf32>
    %cst_10 = arith.constant dense<0.000000e+00> : vector<8xf32>
    %13 = vector.multi_reduction <add>, %12, %cst_10 [1] : vector<8x512xf32> to vector<8xf32>
    %14 = vector.shape_cast %13 : vector<8xf32> to vector<8x1xf32>
    %c0_11 = arith.constant 0 : index
    %c0_12 = arith.constant 0 : index
    %15 = vector.load %arg5[%c0_11, %c0_12] : memref<1x1xf32, #tpu.memory_space<vmem>>, vector<1x1xf32>
    %16 = vector.broadcast %15 : vector<1x1xf32> to vector<8x1xf32>
    %17 = arith.addf %14, %16 : vector<8x1xf32>
    %c0_13 = arith.constant 0 : index
    %c0_14 = arith.constant 0 : index
    %18 = vector.load %arg7[%c0_13, %c0_14] : memref<8x1xf32, #tpu.memory_space<vmem>>, vector<8x1xf32>
    tpu.vector_store %arg7[%c0_13, %c0_14], %17 {strides = array<i32>} : memref<8x1xf32, #tpu.memory_space<vmem>>, vector<8x1xf32>,
    return
  }
  func.func @transform_0(%arg0: i32) -> (i32, i32) {
    %c0_i32 = arith.constant 0 : i32
    %c0_i32_0 = arith.constant 0 : i32
    %c0_i32_1 = arith.constant 0 : i32
    return %c0_i32, %c0_i32_0 : i32, i32
  }
  func.func @transform_1(%arg0: i32) -> (i32, i32) {
    %c0_i32 = arith.constant 0 : i32
    %c0_i32_0 = arith.constant 0 : i32
    %c0_i32_1 = arith.constant 0 : i32
    return %c0_i32, %c0_i32_0 : i32, i32
  }
  func.func @transform_2(%arg0: i32) -> (i32, i32) {
    %c0_i32 = arith.constant 0 : i32
    %c0_i32_0 = arith.constant 0 : i32
    %c0_i32_1 = arith.constant 0 : i32
    return %c0_i32, %c0_i32_0 : i32, i32
  }
  func.func @transform_3(%arg0: i32) -> (i32, i32) {
    %c0_i32 = arith.constant 0 : i32
    %c0_i32_0 = arith.constant 0 : i32
    %c0_i32_1 = arith.constant 0 : i32
    return %c0_i32, %c0_i32_0 : i32, i32
  }
  func.func @transform_4(%arg0: i32) -> (i32, i32) {
    %c0_i32 = arith.constant 0 : i32
    %c0_i32_0 = arith.constant 0 : i32
    %c0_i32_1 = arith.constant 0 : i32
    return %c0_i32, %c0_i32_0 : i32, i32
  }
  func.func @transform_5(%arg0: i32) -> (i32, i32) {
    %c0_i32 = arith.constant 0 : i32
    %c0_i32_0 = arith.constant 0 : i32
    %c0_i32_1 = arith.constant 0 : i32
    return %c0_i32, %c0_i32_0 : i32, i32
  }
  func.func @transform_6(%arg0: i32) -> (i32, i32) {
    %c0_i32 = arith.constant 0 : i32
    %c0_i32_0 = arith.constant 0 : i32
    %c0_i32_1 = arith.constant 0 : i32
    return %c0_i32, %c0_i32_0 : i32, i32
  }
}

</mosaic_0001>

<llo_original>
// kernel: tpu_custom_call.1
$region0: #{tpu_custom_call.1}
  #allocation0 [shape = 'u32[]', space=smem, size = 0x4, offset = 0x4, fixed_abs, tag = 'smem constant byte address 0x4 - core index']
  #allocation1 [shape = 'u32[72,128]{1,0:T(1,128)}', space=vmem, size = 0x9000, scoped, tag = 'internal scratch']
  #allocation2 [shape = 'f32[1,1]{1,0:T(1,128)S(1)}', space=vmem, size = 0x200, scoped, tag = 'scoped memory for tpu_custom_call.1']
  %s0 = inlined_call_operand.hbm [shape: bf16[8,768], index: 0, kind: input, shape index: {}]
  %s1 = inlined_call_operand.hbm [shape: bf16[768,512], index: 1, kind: input, shape index: {}]
  %s2 = inlined_call_operand.hbm [shape: f32[1,512], index: 2, kind: input, shape index: {}]
  %s3 = inlined_call_operand.vmem [shape: f32[1,512], index: 3, kind: input, shape index: {}]
  %s4 = inlined_call_operand.<no memory space> [shape: f32[1,1], index: 4, kind: input, shape index: {}]
  %s5 = inlined_call_operand.hbm [shape: f32[8,512], index: 5, kind: input, shape index: {}]
  %s6 = inlined_call_operand.vmem [shape: f32[8,1], index: 6, kind: output, shape index: {}]
  %s7 = sld [smem:[#allocation0]]
  $region50: #{tpu_custom_call.1} parent=0
    _
  %s9 = ssub.s32 1, %s7
  %s10 = scalar_select 0, %s9, %s7
  %v11 = vstv %s4
  %12 = vst [vmem:[#allocation2] sm:$0x1] %v11
  $region1: #{tpu_custom_call.1} parent=0
    #allocation3 [shape = 'u8[12288]{0}', space=vmem, size = 0x3000, scoped, tag = 'input window, operand 0, single buffered']
    #allocation4 [shape = 's32[1]{0}', space=sflag, size = 0x4, scoped, tag = 'scoped memory for tpu_custom_call.1']
    #allocation5 [shape = 'u8[786432]{0}', space=vmem, size = 0xc0000, scoped, tag = 'input window, operand 1, single buffered']
    #allocation6 [shape = 's32[1]{0}', space=sflag, size = 0x4, scoped, tag = 'scoped memory for tpu_custom_call.1']
    #allocation7 [shape = 'u8[2048]{0}', space=vmem, size = 0x800, scoped, tag = 'input window, operand 2, single buffered']
    #allocation8 [shape = 'u8[16384]{0}', space=vmem, size = 0x4000, scoped, tag = 'input window, operand 5, single buffered']
    #allocation9 [shape = 's32[1]{0}', space=sflag, size = 0x4, scoped, tag = 'scoped memory for tpu_custom_call.1']
    %13 = vsyncpa [#allocation4], 0
    %14 = vsyncpa [#allocation6], 0
    %15 = vsyncpa [#allocation9], 0
    // Predicated region
    $region2: #{tpu_custom_call.1} parent=1 // pred_check
      _
    $region3: #{tpu_custom_call.1} parent=1 // pred_check_branch
      %17 = sbr.rel (0) target = $region5
    $region4: #{tpu_custom_call.1} parent=1 // pred_region
      %19 = vsyncadd [#allocation4], 0
      %s21 = sshll.u32 %s0, 4
      %s22 = int_to_ptr.hbm [resolvable:$true] %s21
      %s23 = sshll.u32 [#allocation3], 4
      %s24 = int_to_ptr.vmem [resolvable:$true] %s23
      %26 = dma.hbm_to_vmem [thread:$0]  %s22, 384, %s24, [#allocation4]
    $region5: #{tpu_custom_call.1} parent=1 // pred_fallthru
      _
    // Predicated region
    $region6: #{tpu_custom_call.1} parent=1 // pred_check
      _
    $region7: #{tpu_custom_call.1} parent=1 // pred_check_branch
      %28 = sbr.rel (0) target = $region9
    $region8: #{tpu_custom_call.1} parent=1 // pred_region
      %30 = vsyncadd [#allocation6], 0
      %s31 = sshll.u32 %s1, 4
      %s32 = int_to_ptr.hbm [resolvable:$true] %s31
      %s33 = sshll.u32 [#allocation5], 4
      %s34 = int_to_ptr.vmem [resolvable:$true] %s33
      %39 = dma.hbm_to_vmem [thread:$0]  %s32, 24576, %s34, [#allocation6], 256, 256, 16
    $region9: #{tpu_custom_call.1} parent=1 // pred_fallthru
      _
    // Predicated region
    $region10: #{tpu_custom_call.1} parent=1 // pred_check
      _
    $region11: #{tpu_custom_call.1} parent=1 // pred_check_branch
      %41 = sbr.rel (0) target = $region13
    $region12: #{tpu_custom_call.1} parent=1 // pred_region
      %43 = vsyncadd [#allocation6], 0
      %s45 = sshll.u32 %s2, 4
      %s46 = int_to_ptr.hbm [resolvable:$true] %s45
      %s47 = sshll.u32 [#allocation7], 4
      %s48 = int_to_ptr.vmem [resolvable:$true] %s47
      %50 = dma.hbm_to_vmem [thread:$0]  %s46, 64, %s48, [#allocation6]
    $region13: #{tpu_custom_call.1} parent=1 // pred_fallthru
      _
    // Predicated region
    $region14: #{tpu_custom_call.1} parent=1 // pred_check
      _
    $region15: #{tpu_custom_call.1} parent=1 // pred_check_branch
      %52 = sbr.rel (0) target = $region17
    $region16: #{tpu_custom_call.1} parent=1 // pred_region
      _
    $region17: #{tpu_custom_call.1} parent=1 // pred_fallthru
      _
    // Predicated region
    $region18: #{tpu_custom_call.1} parent=1 // pred_check
      _
    $region19: #{tpu_custom_call.1} parent=1 // pred_check_branch
      %54 = sbr.rel (0) target = $region21
    $region20: #{tpu_custom_call.1} parent=1 // pred_region
      _
    $region21: #{tpu_custom_call.1} parent=1 // pred_fallthru
      _
    // Predicated region
    $region22: #{tpu_custom_call.1} parent=1 // pred_check
      _
    $region23: #{tpu_custom_call.1} parent=1 // pred_check_branch
      %56 = sbr.rel (0) target = $region25
    $region24: #{tpu_custom_call.1} parent=1 // pred_region
      %58 = vsyncadd [#allocation9], 0
      %s60 = sshll.u32 %s5, 4
      %s61 = int_to_ptr.hbm [resolvable:$true] %s60
      %s62 = sshll.u32 [#allocation8], 4
      %s63 = int_to_ptr.vmem [resolvable:$true] %s62
      %65 = dma.hbm_to_vmem [thread:$0]  %s61, 512, %s63, [#allocation9]
    $region25: #{tpu_custom_call.1} parent=1 // pred_fallthru
      _
    // Predicated region
    $region26: #{tpu_custom_call.1} parent=1 // pred_check
      _
    $region27: #{tpu_custom_call.1} parent=1 // pred_check_branch
      %67 = sbr.rel (0) target = $region29
    $region28: #{tpu_custom_call.1} parent=1 // pred_region
      %69 = dma.done [#allocation4], 384
    $region29: #{tpu_custom_call.1} parent=1 // pred_fallthru
      _
    // Predicated region
    $region30: #{tpu_custom_call.1} parent=1 // pred_check
      _
    $region31: #{tpu_custom_call.1} parent=1 // pred_check_branch
      %71 = sbr.rel (0) target = $region33
    $region32: #{tpu_custom_call.1} parent=1 // pred_region
      %73 = dma.done [#allocation6], 24576
    $region33: #{tpu_custom_call.1} parent=1 // pred_fallthru
      _
    // Predicated region
    $region34: #{tpu_custom_call.1} parent=1 // pred_check
      _
    $region35: #{tpu_custom_call.1} parent=1 // pred_check_branch
      %75 = sbr.rel (0) target = $region37
    $region36: #{tpu_custom_call.1} parent=1 // pred_region
      %77 = dma.done [#allocation6], 64
    $region37: #{tpu_custom_call.1} parent=1 // pred_fallthru
      _
    // Predicated region
    $region38: #{tpu_custom_call.1} parent=1 // pred_check
      _
    $region39: #{tpu_custom_call.1} parent=1 // pred_check_branch
      %79 = sbr.rel (0) target = $region41
    $region40: #{tpu_custom_call.1} parent=1 // pred_region
      %81 = dma.done [#allocation9], 512
    $region41: #{tpu_custom_call.1} parent=1 // pred_fallthru
      _
    %v82 = vld [vmem:[#allocation3] sm:$0xff]
    %v83 = vld [vmem:[#allocation3 + $0x8] sm:$0xff]
    %v84 = vld [vmem:[#allocation3 + $0x10] sm:$0xff]
    %v85 = vld [vmem:[#allocation5] sm:$0xff]
    %v86 = vld [vmem:[#allocation5 + $0x8] sm:$0xff]
    %v87 = vld [vmem:[#allocation5 + $0x10] sm:$0xff]
    %v88 = vld [vmem:[#allocation5 + $0x18] sm:$0xff]
    %v89 = vld [vmem:[#allocation5 + $0x20] sm:$0xff]
    %v90 = vld [vmem:[#allocation5 + $0x28] sm:$0xff]
    %v91 = vld [vmem:[#allocation5 + $0x30] sm:$0xff]
    %v92 = vld [vmem:[#allocation5 + $0x38] sm:$0xff]
    %v93 = vld [vmem:[#allocation5 + $0x40] sm:$0xff]
    %v94 = vld [vmem:[#allocation5 + $0x48] sm:$0xff]
    %v95 = vld [vmem:[#allocation5 + $0x50] sm:$0xff]
    %v96 = vld [vmem:[#allocation5 + $0x58] sm:$0xff]
    %v97 = vld [vmem:[#allocation5 + $0x60] sm:$0xff]
    %v98 = vld [vmem:[#allocation5 + $0x68] sm:$0xff]
    %v99 = vld [vmem:[#allocation5 + $0x70] sm:$0xff]
    %v100 = vld [vmem:[#allocation5 + $0x78] sm:$0xff]
    %v101 = vld [vmem:[#allocation5 + $0x80] sm:$0xff]
    %v102 = vld [vmem:[#allocation5 + $0x88] sm:$0xff]
    %v103 = vld [vmem:[#allocation5 + $0x90] sm:$0xff]
    %v104 = vld [vmem:[#allocation5 + $0x98] sm:$0xff]
    %v105 = vld [vmem:[#allocation5 + $0xa0] sm:$0xff]
    %v106 = vld [vmem:[#allocation5 + $0xa8] sm:$0xff]
    %v107 = vld [vmem:[#allocation5 + $0xb0] sm:$0xff]
    %v108 = vld [vmem:[#allocation5 + $0xb8] sm:$0xff]
    %v109 = vld [vmem:[#allocation5 + $0xc0] sm:$0xff]
    %v110 = vld [vmem:[#allocation5 + $0xc8] sm:$0xff]
    %v111 = vld [vmem:[#allocation5 + $0xd0] sm:$0xff]
    %v112 = vld [vmem:[#allocation5 + $0xd8] sm:$0xff]
    %v113 = vld [vmem:[#allocation5 + $0xe0] sm:$0xff]
    %v114 = vld [vmem:[#allocation5 + $0xe8] sm:$0xff]
    %v115 = vld [vmem:[#allocation5 + $0xf0] sm:$0xff]
    %v116 = vld [vmem:[#allocation5 + $0xf8] sm:$0xff]
    %v117 = vld [vmem:[#allocation5 + $0x100] sm:$0xff]
    %v118 = vld [vmem:[#allocation5 + $0x108] sm:$0xff]
    %v119 = vld [vmem:[#allocation5 + $0x110] sm:$0xff]
    %v120 = vld [vmem:[#allocation5 + $0x118] sm:$0xff]
    %v121 = vld [vmem:[#allocation5 + $0x120] sm:$0xff]
    %v122 = vld [vmem:[#allocation5 + $0x128] sm:$0xff]
    %v123 = vld [vmem:[#allocation5 + $0x130] sm:$0xff]
    %v124 = vld [vmem:[#allocation5 + $0x138] sm:$0xff]
    %v125 = vld [vmem:[#allocation5 + $0x140] sm:$0xff]
    %v126 = vld [vmem:[#allocation5 + $0x148] sm:$0xff]
    %v127 = vld [vmem:[#allocation5 + $0x150] sm:$0xff]
    %v128 = vld [vmem:[#allocation5 + $0x158] sm:$0xff]
    %v129 = vld [vmem:[#allocation5 + $0x160] sm:$0xff]
    %v130 = vld [vmem:[#allocation5 + $0x168] sm:$0xff]
    %v131 = vld [vmem:[#allocation5 + $0x170] sm:$0xff]
    %v132 = vld [vmem:[#allocation5 + $0x178] sm:$0xff]
    %v133 = vld [vmem:[#allocation5 + $0x180] sm:$0xff]
    %v134 = vld [vmem:[#allocation5 + $0x188] sm:$0xff]
    %v135 = vld [vmem:[#allocation5 + $0x190] sm:$0xff]
    %v136 = vld [vmem:[#allocation5 + $0x198] sm:$0xff]
    %v137 = vld [vmem:[#allocation5 + $0x1a0] sm:$0xff]
    %v138 = vld [vmem:[#allocation5 + $0x1a8] sm:$0xff]
    %v139 = vld [vmem:[#allocation5 + $0x1b0] sm:$0xff]
    %v140 = vld [vmem:[#allocation5 + $0x1b8] sm:$0xff]
    %v141 = vld [vmem:[#allocation5 + $0x1c0] sm:$0xff]
    %v142 = vld [vmem:[#allocation5 + $0x1c8] sm:$0xff]
    %v143 = vld [vmem:[#allocation5 + $0x1d0] sm:$0xff]
    %v144 = vld [vmem:[#allocation5 + $0x1d8] sm:$0xff]
    %v145 = vld [vmem:[#allocation5 + $0x1e0] sm:$0xff]
    %v146 = vld [vmem:[#allocation5 + $0x1e8] sm:$0xff]
    %v147 = vld [vmem:[#allocation5 + $0x1f0] sm:$0xff]
    %v148 = vld [vmem:[#allocation5 + $0x1f8] sm:$0xff]
    %v149 = vld [vmem:[#allocation5 + $0x200] sm:$0xff]
    %v150 = vld [vmem:[#allocation5 + $0x208] sm:$0xff]
    %v151 = vld [vmem:[#allocation5 + $0x210] sm:$0xff]
    %v152 = vld [vmem:[#allocation5 + $0x218] sm:$0xff]
    %v153 = vld [vmem:[#allocation5 + $0x220] sm:$0xff]
    %v154 = vld [vmem:[#allocation5 + $0x228] sm:$0xff]
    %v155 = vld [vmem:[#allocation5 + $0x230] sm:$0xff]
    %v156 = vld [vmem:[#allocation5 + $0x238] sm:$0xff]
    %v157 = vld [vmem:[#allocation5 + $0x240] sm:$0xff]
    %v158 = vld [vmem:[#allocation5 + $0x248] sm:$0xff]
    %v159 = vld [vmem:[#allocation5 + $0x250] sm:$0xff]
    %v160 = vld [vmem:[#allocation5 + $0x258] sm:$0xff]
    %v161 = vld [vmem:[#allocation5 + $0x260] sm:$0xff]
    %v162 = vld [vmem:[#allocation5 + $0x268] sm:$0xff]
    %v163 = vld [vmem:[#allocation5 + $0x270] sm:$0xff]
    %v164 = vld [vmem:[#allocation5 + $0x278] sm:$0xff]
    %v165 = vld [vmem:[#allocation5 + $0x280] sm:$0xff]
    %v166 = vld [vmem:[#allocation5 + $0x288] sm:$0xff]
    %v167 = vld [vmem:[#allocation5 + $0x290] sm:$0xff]
    %v168 = vld [vmem:[#allocation5 + $0x298] sm:$0xff]
    %v169 = vld [vmem:[#allocation5 + $0x2a0] sm:$0xff]
    %v170 = vld [vmem:[#allocation5 + $0x2a8] sm:$0xff]
    %v171 = vld [vmem:[#allocation5 + $0x2b0] sm:$0xff]
    %v172 = vld [vmem:[#allocation5 + $0x2b8] sm:$0xff]
    %v173 = vld [vmem:[#allocation5 + $0x2c0] sm:$0xff]
    %v174 = vld [vmem:[#allocation5 + $0x2c8] sm:$0xff]
    %v175 = vld [vmem:[#allocation5 + $0x2d0] sm:$0xff]
    %v176 = vld [vmem:[#allocation5 + $0x2d8] sm:$0xff]
    %v177 = vld [vmem:[#allocation5 + $0x2e0] sm:$0xff]
    %v178 = vld [vmem:[#allocation5 + $0x2e8] sm:$0xff]
    %v179 = vld [vmem:[#allocation5 + $0x2f0] sm:$0xff]
    %v180 = vld [vmem:[#allocation5 + $0x2f8] sm:$0xff]
    %v181 = vld [vmem:[#allocation5 + $0x300] sm:$0xff]
    %v182 = vld [vmem:[#allocation5 + $0x308] sm:$0xff]
    %v183 = vld [vmem:[#allocation5 + $0x310] sm:$0xff]
    %v184 = vld [vmem:[#allocation5 + $0x318] sm:$0xff]
    %v185 = vld [vmem:[#allocation5 + $0x320] sm:$0xff]
    %v186 = vld [vmem:[#allocation5 + $0x328] sm:$0xff]
    %v187 = vld [vmem:[#allocation5 + $0x330] sm:$0xff]
    %v188 = vld [vmem:[#allocation5 + $0x338] sm:$0xff]
    %v189 = vld [vmem:[#allocation5 + $0x340] sm:$0xff]
    %v190 = vld [vmem:[#allocation5 + $0x348] sm:$0xff]
    %v191 = vld [vmem:[#allocation5 + $0x350] sm:$0xff]
    %v192 = vld [vmem:[#allocation5 + $0x358] sm:$0xff]
    %v193 = vld [vmem:[#allocation5 + $0x360] sm:$0xff]
    %v194 = vld [vmem:[#allocation5 + $0x368] sm:$0xff]
    %v195 = vld [vmem:[#allocation5 + $0x370] sm:$0xff]
    %v196 = vld [vmem:[#allocation5 + $0x378] sm:$0xff]
    %v197 = vld [vmem:[#allocation5 + $0x380] sm:$0xff]
    %v198 = vld [vmem:[#allocation5 + $0x388] sm:$0xff]
    %v199 = vld [vmem:[#allocation5 + $0x390] sm:$0xff]
    %v200 = vld [vmem:[#allocation5 + $0x398] sm:$0xff]
    %v201 = vld [vmem:[#allocation5 + $0x3a0] sm:$0xff]
    %v202 = vld [vmem:[#allocation5 + $0x3a8] sm:$0xff]
    %v203 = vld [vmem:[#allocation5 + $0x3b0] sm:$0xff]
    %v204 = vld [vmem:[#allocation5 + $0x3b8] sm:$0xff]
    %v205 = vld [vmem:[#allocation5 + $0x3c0] sm:$0xff]
    %v206 = vld [vmem:[#allocation5 + $0x3c8] sm:$0xff]
    %v207 = vld [vmem:[#allocation5 + $0x3d0] sm:$0xff]
    %v208 = vld [vmem:[#allocation5 + $0x3d8] sm:$0xff]
    %v209 = vld [vmem:[#allocation5 + $0x3e0] sm:$0xff]
    %v210 = vld [vmem:[#allocation5 + $0x3e8] sm:$0xff]
    %v211 = vld [vmem:[#allocation5 + $0x3f0] sm:$0xff]
    %v212 = vld [vmem:[#allocation5 + $0x3f8] sm:$0xff]
    %v213 = vld [vmem:[#allocation5 + $0x400] sm:$0xff]
    %v214 = vld [vmem:[#allocation5 + $0x408] sm:$0xff]
    %v215 = vld [vmem:[#allocation5 + $0x410] sm:$0xff]
    %v216 = vld [vmem:[#allocation5 + $0x418] sm:$0xff]
    %v217 = vld [vmem:[#allocation5 + $0x420] sm:$0xff]
    %v218 = vld [vmem:[#allocation5 + $0x428] sm:$0xff]
    %v219 = vld [vmem:[#allocation5 + $0x430] sm:$0xff]
    %v220 = vld [vmem:[#allocation5 + $0x438] sm:$0xff]
    %v221 = vld [vmem:[#allocation5 + $0x440] sm:$0xff]
    %v222 = vld [vmem:[#allocation5 + $0x448] sm:$0xff]
    %v223 = vld [vmem:[#allocation5 + $0x450] sm:$0xff]
    %v224 = vld [vmem:[#allocation5 + $0x458] sm:$0xff]
    %v225 = vld [vmem:[#allocation5 + $0x460] sm:$0xff]
    %v226 = vld [vmem:[#allocation5 + $0x468] sm:$0xff]
    %v227 = vld [vmem:[#allocation5 + $0x470] sm:$0xff]
    %v228 = vld [vmem:[#allocation5 + $0x478] sm:$0xff]
    %v229 = vld [vmem:[#allocation5 + $0x480] sm:$0xff]
    %v230 = vld [vmem:[#allocation5 + $0x488] sm:$0xff]
    %v231 = vld [vmem:[#allocation5 + $0x490] sm:$0xff]
    %v232 = vld [vmem:[#allocation5 + $0x498] sm:$0xff]
    %v233 = vld [vmem:[#allocation5 + $0x4a0] sm:$0xff]
    %v234 = vld [vmem:[#allocation5 + $0x4a8] sm:$0xff]
    %v235 = vld [vmem:[#allocation5 + $0x4b0] sm:$0xff]
    %v236 = vld [vmem:[#allocation5 + $0x4b8] sm:$0xff]
    %v237 = vld [vmem:[#allocation5 + $0x4c0] sm:$0xff]
    %v238 = vld [vmem:[#allocation5 + $0x4c8] sm:$0xff]
    %v239 = vld [vmem:[#allocation5 + $0x4d0] sm:$0xff]
    %v240 = vld [vmem:[#allocation5 + $0x4d8] sm:$0xff]
    %v241 = vld [vmem:[#allocation5 + $0x4e0] sm:$0xff]
    %v242 = vld [vmem:[#allocation5 + $0x4e8] sm:$0xff]
    %v243 = vld [vmem:[#allocation5 + $0x4f0] sm:$0xff]
    %v244 = vld [vmem:[#allocation5 + $0x4f8] sm:$0xff]
    %v245 = vld [vmem:[#allocation5 + $0x500] sm:$0xff]
    %v246 = vld [vmem:[#allocation5 + $0x508] sm:$0xff]
    %v247 = vld [vmem:[#allocation5 + $0x510] sm:$0xff]
    %v248 = vld [vmem:[#allocation5 + $0x518] sm:$0xff]
    %v249 = vld [vmem:[#allocation5 + $0x520] sm:$0xff]
    %v250 = vld [vmem:[#allocation5 + $0x528] sm:$0xff]
    %v251 = vld [vmem:[#allocation5 + $0x530] sm:$0xff]
    %v252 = vld [vmem:[#allocation5 + $0x538] sm:$0xff]
    %v253 = vld [vmem:[#allocation5 + $0x540] sm:$0xff]
    %v254 = vld [vmem:[#allocation5 + $0x548] sm:$0xff]
    %v255 = vld [vmem:[#allocation5 + $0x550] sm:$0xff]
    %v256 = vld [vmem:[#allocation5 + $0x558] sm:$0xff]
    %v257 = vld [vmem:[#allocation5 + $0x560] sm:$0xff]
    %v258 = vld [vmem:[#allocation5 + $0x568] sm:$0xff]
    %v259 = vld [vmem:[#allocation5 + $0x570] sm:$0xff]
    %v260 = vld [vmem:[#allocation5 + $0x578] sm:$0xff]
    %v261 = vld [vmem:[#allocation5 + $0x580] sm:$0xff]
    %v262 = vld [vmem:[#allocation5 + $0x588] sm:$0xff]
    %v263 = vld [vmem:[#allocation5 + $0x590] sm:$0xff]
    %v264 = vld [vmem:[#allocation5 + $0x598] sm:$0xff]
    %v265 = vld [vmem:[#allocation5 + $0x5a0] sm:$0xff]
    %v266 = vld [vmem:[#allocation5 + $0x5a8] sm:$0xff]
    %v267 = vld [vmem:[#allocation5 + $0x5b0] sm:$0xff]
    %v268 = vld [vmem:[#allocation5 + $0x5b8] sm:$0xff]
    %v269 = vld [vmem:[#allocation5 + $0x5c0] sm:$0xff]
    %v270 = vld [vmem:[#allocation5 + $0x5c8] sm:$0xff]
    %v271 = vld [vmem:[#allocation5 + $0x5d0] sm:$0xff]
    %v272 = vld [vmem:[#allocation5 + $0x5d8] sm:$0xff]
    %v273 = vld [vmem:[#allocation5 + $0x5e0] sm:$0xff]
    %v274 = vld [vmem:[#allocation5 + $0x5e8] sm:$0xff]
    %v275 = vld [vmem:[#allocation5 + $0x5f0] sm:$0xff]
    %v276 = vld [vmem:[#allocation5 + $0x5f8] sm:$0xff]
    %v277 = vld [vmem:[#allocation7] sm:$0xf]
    %v279 = vperm.slane %v277, 0
    %v280 = vperm.slane %v277, 1
    %v281 = vperm.slane %v277, 2
    %v282 = vperm.slane %v277, 3
    %v290 = vunpack.c.l.b16 %v82
    %v291 = vunpack.c.h.b16 %v82
    %v292 = vunpack.c.l.b16 %v83
    %v293 = vunpack.c.h.b16 %v83
    %v294 = vunpack.c.l.b16 %v84
    %v295 = vunpack.c.h.b16 %v84
    %v296 = vpack.c.b16 %v290, %v290
    %v297 = vpack.c.b16 %v291, %v291
    %v298 = vpack.c.b16 %v292, %v292
    %v299 = vpack.c.b16 %v293, %v293
    %v300 = vpack.c.b16 %v294, %v294
    %v301 = vpack.c.b16 %v295, %v295
    %v500 = vunpack.c.l.b16 %v85
    %v501 = vunpack.c.h.b16 %v85
    %v502 = vunpack.c.l.b16 %v86
    %v503 = vunpack.c.h.b16 %v86
    %v504 = vunpack.c.l.b16 %v87
    %v505 = vunpack.c.h.b16 %v87
    %v506 = vunpack.c.l.b16 %v88
    %v507 = vunpack.c.h.b16 %v88
    %v508 = vunpack.c.l.b16 %v89
    %v509 = vunpack.c.h.b16 %v89
    %v510 = vunpack.c.l.b16 %v90
    %v511 = vunpack.c.h.b16 %v90
    %v512 = vunpack.c.l.b16 %v91
    %v513 = vunpack.c.h.b16 %v91
    %v514 = vunpack.c.l.b16 %v92
    %v515 = vunpack.c.h.b16 %v92
    %v516 = vunpack.c.l.b16 %v93
    %v517 = vunpack.c.h.b16 %v93
    %v518 = vunpack.c.l.b16 %v94
    %v519 = vunpack.c.h.b16 %v94
    %v520 = vunpack.c.l.b16 %v95
    %v521 = vunpack.c.h.b16 %v95
    %v522 = vunpack.c.l.b16 %v96
    %v523 = vunpack.c.h.b16 %v96
    %v524 = vunpack.c.l.b16 %v97
    %v525 = vunpack.c.h.b16 %v97
    %v526 = vunpack.c.l.b16 %v98
    %v527 = vunpack.c.h.b16 %v98
    %v528 = vunpack.c.l.b16 %v99
    %v529 = vunpack.c.h.b16 %v99
    %v530 = vunpack.c.l.b16 %v100
    %v531 = vunpack.c.h.b16 %v100
    %v532 = vunpack.c.l.b16 %v101
    %v533 = vunpack.c.h.b16 %v101
    %v534 = vunpack.c.l.b16 %v102
    %v535 = vunpack.c.h.b16 %v102
    %v536 = vunpack.c.l.b16 %v103
    %v537 = vunpack.c.h.b16 %v103
    %v538 = vunpack.c.l.b16 %v104
    %v539 = vunpack.c.h.b16 %v104
    %v540 = vunpack.c.l.b16 %v105
    %v541 = vunpack.c.h.b16 %v105
    %v542 = vunpack.c.l.b16 %v106
    %v543 = vunpack.c.h.b16 %v106
    %v544 = vunpack.c.l.b16 %v107
    %v545 = vunpack.c.h.b16 %v107
    %v546 = vunpack.c.l.b16 %v108
    %v547 = vunpack.c.h.b16 %v108
    %v548 = vunpack.c.l.b16 %v109
    %v549 = vunpack.c.h.b16 %v109
    %v550 = vunpack.c.l.b16 %v110
    %v551 = vunpack.c.h.b16 %v110
    %v552 = vunpack.c.l.b16 %v111
    %v553 = vunpack.c.h.b16 %v111
    %v554 = vunpack.c.l.b16 %v112
    %v555 = vunpack.c.h.b16 %v112
    %v556 = vunpack.c.l.b16 %v113
    %v557 = vunpack.c.h.b16 %v113
    %v558 = vunpack.c.l.b16 %v114
    %v559 = vunpack.c.h.b16 %v114
    %v560 = vunpack.c.l.b16 %v115
    %v561 = vunpack.c.h.b16 %v115
    %v562 = vunpack.c.l.b16 %v116
    %v563 = vunpack.c.h.b16 %v116
    %v564 = vunpack.c.l.b16 %v117
    %v565 = vunpack.c.h.b16 %v117
    %v566 = vunpack.c.l.b16 %v118
    %v567 = vunpack.c.h.b16 %v118
    %v568 = vunpack.c.l.b16 %v119
    %v569 = vunpack.c.h.b16 %v119
    %v570 = vunpack.c.l.b16 %v120
    %v571 = vunpack.c.h.b16 %v120
    %v572 = vunpack.c.l.b16 %v121
    %v573 = vunpack.c.h.b16 %v121
    %v574 = vunpack.c.l.b16 %v122
    %v575 = vunpack.c.h.b16 %v122
    %v576 = vunpack.c.l.b16 %v123
    %v577 = vunpack.c.h.b16 %v123
    %v578 = vunpack.c.l.b16 %v124
    %v579 = vunpack.c.h.b16 %v124
    %v580 = vunpack.c.l.b16 %v125
    %v581 = vunpack.c.h.b16 %v125
    %v582 = vunpack.c.l.b16 %v126
    %v583 = vunpack.c.h.b16 %v126
    %v584 = vunpack.c.l.b16 %v127
    %v585 = vunpack.c.h.b16 %v127
    %v586 = vunpack.c.l.b16 %v128
    %v587 = vunpack.c.h.b16 %v128
    %v588 = vunpack.c.l.b16 %v129
    %v589 = vunpack.c.h.b16 %v129
    %v590 = vunpack.c.l.b16 %v130
    %v591 = vunpack.c.h.b16 %v130
    %v592 = vunpack.c.l.b16 %v131
    %v593 = vunpack.c.h.b16 %v131
    %v594 = vunpack.c.l.b16 %v132
    %v595 = vunpack.c.h.b16 %v132
    %v596 = vunpack.c.l.b16 %v133
    %v597 = vunpack.c.h.b16 %v133
    %v598 = vunpack.c.l.b16 %v134
    %v599 = vunpack.c.h.b16 %v134
    %v600 = vunpack.c.l.b16 %v135
    %v601 = vunpack.c.h.b16 %v135
    %v602 = vunpack.c.l.b16 %v136
    %v603 = vunpack.c.h.b16 %v136
    %v604 = vunpack.c.l.b16 %v137
    %v605 = vunpack.c.h.b16 %v137
    %v606 = vunpack.c.l.b16 %v138
    %v607 = vunpack.c.h.b16 %v138
    %v608 = vunpack.c.l.b16 %v139
    %v609 = vunpack.c.h.b16 %v139
    %v610 = vunpack.c.l.b16 %v140
    %v611 = vunpack.c.h.b16 %v140
    %v612 = vunpack.c.l.b16 %v141
    %v613 = vunpack.c.h.b16 %v141
    %v614 = vunpack.c.l.b16 %v142
    %v615 = vunpack.c.h.b16 %v142
    %v616 = vunpack.c.l.b16 %v143
    %v617 = vunpack.c.h.b16 %v143
    %v618 = vunpack.c.l.b16 %v144
    %v619 = vunpack.c.h.b16 %v144
    %v620 = vunpack.c.l.b16 %v145
    %v621 = vunpack.c.h.b16 %v145
    %v622 = vunpack.c.l.b16 %v146
    %v623 = vunpack.c.h.b16 %v146
    %v624 = vunpack.c.l.b16 %v147
    %v625 = vunpack.c.h.b16 %v147
    %v626 = vunpack.c.l.b16 %v148
    %v627 = vunpack.c.h.b16 %v148
    %v628 = vunpack.c.l.b16 %v149
    %v629 = vunpack.c.h.b16 %v149
    %v630 = vunpack.c.l.b16 %v150
    %v631 = vunpack.c.h.b16 %v150
    %v632 = vunpack.c.l.b16 %v151
    %v633 = vunpack.c.h.b16 %v151
    %v634 = vunpack.c.l.b16 %v152
    %v635 = vunpack.c.h.b16 %v152
    %v636 = vunpack.c.l.b16 %v153
    %v637 = vunpack.c.h.b16 %v153
    %v638 = vunpack.c.l.b16 %v154
    %v639 = vunpack.c.h.b16 %v154
    %v640 = vunpack.c.l.b16 %v155
    %v641 = vunpack.c.h.b16 %v155
    %v642 = vunpack.c.l.b16 %v156
    %v643 = vunpack.c.h.b16 %v156
    %v644 = vunpack.c.l.b16 %v157
    %v645 = vunpack.c.h.b16 %v157
    %v646 = vunpack.c.l.b16 %v158
    %v647 = vunpack.c.h.b16 %v158
    %v648 = vunpack.c.l.b16 %v159
    %v649 = vunpack.c.h.b16 %v159
    %v650 = vunpack.c.l.b16 %v160
    %v651 = vunpack.c.h.b16 %v160
    %v652 = vunpack.c.l.b16 %v161
    %v653 = vunpack.c.h.b16 %v161
    %v654 = vunpack.c.l.b16 %v162
    %v655 = vunpack.c.h.b16 %v162
    %v656 = vunpack.c.l.b16 %v163
    %v657 = vunpack.c.h.b16 %v163
    %v658 = vunpack.c.l.b16 %v164
    %v659 = vunpack.c.h.b16 %v164
    %v660 = vunpack.c.l.b16 %v165
    %v661 = vunpack.c.h.b16 %v165
    %v662 = vunpack.c.l.b16 %v166
    %v663 = vunpack.c.h.b16 %v166
    %v664 = vunpack.c.l.b16 %v167
    %v665 = vunpack.c.h.b16 %v167
    %v666 = vunpack.c.l.b16 %v168
    %v667 = vunpack.c.h.b16 %v168
    %v668 = vunpack.c.l.b16 %v169
    %v669 = vunpack.c.h.b16 %v169
    %v670 = vunpack.c.l.b16 %v170
    %v671 = vunpack.c.h.b16 %v170
    %v672 = vunpack.c.l.b16 %v171
    %v673 = vunpack.c.h.b16 %v171
    %v674 = vunpack.c.l.b16 %v172
    %v675 = vunpack.c.h.b16 %v172
    %v676 = vunpack.c.l.b16 %v173
    %v677 = vunpack.c.h.b16 %v173
    %v678 = vunpack.c.l.b16 %v174
    %v679 = vunpack.c.h.b16 %v174
    %v680 = vunpack.c.l.b16 %v175
    %v681 = vunpack.c.h.b16 %v175
    %v682 = vunpack.c.l.b16 %v176
    %v683 = vunpack.c.h.b16 %v176
    %v684 = vunpack.c.l.b16 %v177
    %v685 = vunpack.c.h.b16 %v177
    %v686 = vunpack.c.l.b16 %v178
    %v687 = vunpack.c.h.b16 %v178
    %v688 = vunpack.c.l.b16 %v179
    %v689 = vunpack.c.h.b16 %v179
    %v690 = vunpack.c.l.b16 %v180
    %v691 = vunpack.c.h.b16 %v180
    %v692 = vunpack.c.l.b16 %v181
    %v693 = vunpack.c.h.b16 %v181
    %v694 = vunpack.c.l.b16 %v182
    %v695 = vunpack.c.h.b16 %v182
    %v696 = vunpack.c.l.b16 %v183
    %v697 = vunpack.c.h.b16 %v183
    %v698 = vunpack.c.l.b16 %v184
    %v699 = vunpack.c.h.b16 %v184
    %v700 = vunpack.c.l.b16 %v185
    %v701 = vunpack.c.h.b16 %v185
    %v702 = vunpack.c.l.b16 %v186
    %v703 = vunpack.c.h.b16 %v186
    %v704 = vunpack.c.l.b16 %v187
    %v705 = vunpack.c.h.b16 %v187
    %v706 = vunpack.c.l.b16 %v188
    %v707 = vunpack.c.h.b16 %v188
    %v708 = vunpack.c.l.b16 %v189
    %v709 = vunpack.c.h.b16 %v189
    %v710 = vunpack.c.l.b16 %v190
    %v711 = vunpack.c.h.b16 %v190
    %v712 = vunpack.c.l.b16 %v191
    %v713 = vunpack.c.h.b16 %v191
    %v714 = vunpack.c.l.b16 %v192
    %v715 = vunpack.c.h.b16 %v192
    %v716 = vunpack.c.l.b16 %v193
    %v717 = vunpack.c.h.b16 %v193
    %v718 = vunpack.c.l.b16 %v194
    %v719 = vunpack.c.h.b16 %v194
    %v720 = vunpack.c.l.b16 %v195
    %v721 = vunpack.c.h.b16 %v195
    %v722 = vunpack.c.l.b16 %v196
    %v723 = vunpack.c.h.b16 %v196
    %v724 = vunpack.c.l.b16 %v197
    %v725 = vunpack.c.h.b16 %v197
    %v726 = vunpack.c.l.b16 %v198
    %v727 = vunpack.c.h.b16 %v198
    %v728 = vunpack.c.l.b16 %v199
    %v729 = vunpack.c.h.b16 %v199
    %v730 = vunpack.c.l.b16 %v200
    %v731 = vunpack.c.h.b16 %v200
    %v732 = vunpack.c.l.b16 %v201
    %v733 = vunpack.c.h.b16 %v201
    %v734 = vunpack.c.l.b16 %v202
    %v735 = vunpack.c.h.b16 %v202
    %v736 = vunpack.c.l.b16 %v203
    %v737 = vunpack.c.h.b16 %v203
    %v738 = vunpack.c.l.b16 %v204
    %v739 = vunpack.c.h.b16 %v204
    %v740 = vunpack.c.l.b16 %v205
    %v741 = vunpack.c.h.b16 %v205
    %v742 = vunpack.c.l.b16 %v206
    %v743 = vunpack.c.h.b16 %v206
    %v744 = vunpack.c.l.b16 %v207
    %v745 = vunpack.c.h.b16 %v207
    %v746 = vunpack.c.l.b16 %v208
    %v747 = vunpack.c.h.b16 %v208
    %v748 = vunpack.c.l.b16 %v209
    %v749 = vunpack.c.h.b16 %v209
    %v750 = vunpack.c.l.b16 %v210
    %v751 = vunpack.c.h.b16 %v210
    %v752 = vunpack.c.l.b16 %v211
    %v753 = vunpack.c.h.b16 %v211
    %v754 = vunpack.c.l.b16 %v212
    %v755 = vunpack.c.h.b16 %v212
    %v756 = vunpack.c.l.b16 %v213
    %v757 = vunpack.c.h.b16 %v213
    %v758 = vunpack.c.l.b16 %v214
    %v759 = vunpack.c.h.b16 %v214
    %v760 = vunpack.c.l.b16 %v215
    %v761 = vunpack.c.h.b16 %v215
    %v762 = vunpack.c.l.b16 %v216
    %v763 = vunpack.c.h.b16 %v216
    %v764 = vunpack.c.l.b16 %v217
    %v765 = vunpack.c.h.b16 %v217
    %v766 = vunpack.c.l.b16 %v218
    %v767 = vunpack.c.h.b16 %v218
    %v768 = vunpack.c.l.b16 %v219
    %v769 = vunpack.c.h.b16 %v219
    %v770 = vunpack.c.l.b16 %v220
    %v771 = vunpack.c.h.b16 %v220
    %v772 = vunpack.c.l.b16 %v221
    %v773 = vunpack.c.h.b16 %v221
    %v774 = vunpack.c.l.b16 %v222
    %v775 = vunpack.c.h.b16 %v222
    %v776 = vunpack.c.l.b16 %v223
    %v777 = vunpack.c.h.b16 %v223
    %v778 = vunpack.c.l.b16 %v224
    %v779 = vunpack.c.h.b16 %v224
    %v780 = vunpack.c.l.b16 %v225
    %v781 = vunpack.c.h.b16 %v225
    %v782 = vunpack.c.l.b16 %v226
    %v783 = vunpack.c.h.b16 %v226
    %v784 = vunpack.c.l.b16 %v227
    %v785 = vunpack.c.h.b16 %v227
    %v786 = vunpack.c.l.b16 %v228
    %v787 = vunpack.c.h.b16 %v228
    %v788 = vunpack.c.l.b16 %v229
    %v789 = vunpack.c.h.b16 %v229
    %v790 = vunpack.c.l.b16 %v230
    %v791 = vunpack.c.h.b16 %v230
    %v792 = vunpack.c.l.b16 %v231
    %v793 = vunpack.c.h.b16 %v231
    %v794 = vunpack.c.l.b16 %v232
    %v795 = vunpack.c.h.b16 %v232
    %v796 = vunpack.c.l.b16 %v233
    %v797 = vunpack.c.h.b16 %v233
    %v798 = vunpack.c.l.b16 %v234
    %v799 = vunpack.c.h.b16 %v234
    %v800 = vunpack.c.l.b16 %v235
    %v801 = vunpack.c.h.b16 %v235
    %v802 = vunpack.c.l.b16 %v236
    %v803 = vunpack.c.h.b16 %v236
    %v804 = vunpack.c.l.b16 %v237
    %v805 = vunpack.c.h.b16 %v237
    %v806 = vunpack.c.l.b16 %v238
    %v807 = vunpack.c.h.b16 %v238
    %v808 = vunpack.c.l.b16 %v239
    %v809 = vunpack.c.h.b16 %v239
    %v810 = vunpack.c.l.b16 %v240
    %v811 = vunpack.c.h.b16 %v240
    %v812 = vunpack.c.l.b16 %v241
    %v813 = vunpack.c.h.b16 %v241
    %v814 = vunpack.c.l.b16 %v242
    %v815 = vunpack.c.h.b16 %v242
    %v816 = vunpack.c.l.b16 %v243
    %v817 = vunpack.c.h.b16 %v243
    %v818 = vunpack.c.l.b16 %v244
    %v819 = vunpack.c.h.b16 %v244
    %v820 = vunpack.c.l.b16 %v245
    %v821 = vunpack.c.h.b16 %v245
    %v822 = vunpack.c.l.b16 %v246
    %v823 = vunpack.c.h.b16 %v246
    %v824 = vunpack.c.l.b16 %v247
    %v825 = vunpack.c.h.b16 %v247
    %v826 = vunpack.c.l.b16 %v248
    %v827 = vunpack.c.h.b16 %v248
    %v828 = vunpack.c.l.b16 %v249
    %v829 = vunpack.c.h.b16 %v249
    %v830 = vunpack.c.l.b16 %v250
    %v831 = vunpack.c.h.b16 %v250
    %v832 = vunpack.c.l.b16 %v251
    %v833 = vunpack.c.h.b16 %v251
    %v834 = vunpack.c.l.b16 %v252
    %v835 = vunpack.c.h.b16 %v252
    %v836 = vunpack.c.l.b16 %v253
    %v837 = vunpack.c.h.b16 %v253
    %v838 = vunpack.c.l.b16 %v254
    %v839 = vunpack.c.h.b16 %v254
    %v840 = vunpack.c.l.b16 %v255
    %v841 = vunpack.c.h.b16 %v255
    %v842 = vunpack.c.l.b16 %v256
    %v843 = vunpack.c.h.b16 %v256
    %v844 = vunpack.c.l.b16 %v257
    %v845 = vunpack.c.h.b16 %v257
    %v846 = vunpack.c.l.b16 %v258
    %v847 = vunpack.c.h.b16 %v258
    %v848 = vunpack.c.l.b16 %v259
    %v849 = vunpack.c.h.b16 %v259
    %v850 = vunpack.c.l.b16 %v260
    %v851 = vunpack.c.h.b16 %v260
    %v852 = vunpack.c.l.b16 %v261
    %v853 = vunpack.c.h.b16 %v261
    %v854 = vunpack.c.l.b16 %v262
    %v855 = vunpack.c.h.b16 %v262
    %v856 = vunpack.c.l.b16 %v263
    %v857 = vunpack.c.h.b16 %v263
    %v858 = vunpack.c.l.b16 %v264
    %v859 = vunpack.c.h.b16 %v264
    %v860 = vunpack.c.l.b16 %v265
    %v861 = vunpack.c.h.b16 %v265
    %v862 = vunpack.c.l.b16 %v266
    %v863 = vunpack.c.h.b16 %v266
    %v864 = vunpack.c.l.b16 %v267
    %v865 = vunpack.c.h.b16 %v267
    %v866 = vunpack.c.l.b16 %v268
    %v867 = vunpack.c.h.b16 %v268
    %v868 = vunpack.c.l.b16 %v269
    %v869 = vunpack.c.h.b16 %v269
    %v870 = vunpack.c.l.b16 %v270
    %v871 = vunpack.c.h.b16 %v270
    %v872 = vunpack.c.l.b16 %v271
    %v873 = vunpack.c.h.b16 %v271
    %v874 = vunpack.c.l.b16 %v272
    %v875 = vunpack.c.h.b16 %v272
    %v876 = vunpack.c.l.b16 %v273
    %v877 = vunpack.c.h.b16 %v273
    %v878 = vunpack.c.l.b16 %v274
    %v879 = vunpack.c.h.b16 %v274
    %v880 = vunpack.c.l.b16 %v275
    %v881 = vunpack.c.h.b16 %v275
    %v882 = vunpack.c.l.b16 %v276
    %v883 = vunpack.c.h.b16 %v276
    %v884 = vpack.c.b16 %v504, %v500
    %v885 = vpack.c.b16 %v505, %v501
    %v886 = vpack.c.b16 %v506, %v502
    %v887 = vpack.c.b16 %v507, %v503
    %v888 = vpack.c.b16 %v512, %v508
    %v889 = vpack.c.b16 %v513, %v509
    %v890 = vpack.c.b16 %v514, %v510
    %v891 = vpack.c.b16 %v515, %v511
    %v892 = vpack.c.b16 %v520, %v516
    %v893 = vpack.c.b16 %v521, %v517
    %v894 = vpack.c.b16 %v522, %v518
    %v895 = vpack.c.b16 %v523, %v519
    %v896 = vpack.c.b16 %v528, %v524
    %v897 = vpack.c.b16 %v529, %v525
    %v898 = vpack.c.b16 %v530, %v526
    %v899 = vpack.c.b16 %v531, %v527
    %v900 = vpack.c.b16 %v536, %v532
    %v901 = vpack.c.b16 %v537, %v533
    %v902 = vpack.c.b16 %v538, %v534
    %v903 = vpack.c.b16 %v539, %v535
    %v904 = vpack.c.b16 %v544, %v540
    %v905 = vpack.c.b16 %v545, %v541
    %v906 = vpack.c.b16 %v546, %v542
    %v907 = vpack.c.b16 %v547, %v543
    %v908 = vpack.c.b16 %v552, %v548
    %v909 = vpack.c.b16 %v553, %v549
    %v910 = vpack.c.b16 %v554, %v550
    %v911 = vpack.c.b16 %v555, %v551
    %v912 = vpack.c.b16 %v560, %v556
    %v913 = vpack.c.b16 %v561, %v557
    %v914 = vpack.c.b16 %v562, %v558
    %v915 = vpack.c.b16 %v563, %v559
    %v916 = vpack.c.b16 %v568, %v564
    %v917 = vpack.c.b16 %v569, %v565
    %v918 = vpack.c.b16 %v570, %v566
    %v919 = vpack.c.b16 %v571, %v567
    %v920 = vpack.c.b16 %v576, %v572
    %v921 = vpack.c.b16 %v577, %v573
    %v922 = vpack.c.b16 %v578, %v574
    %v923 = vpack.c.b16 %v579, %v575
    %v924 = vpack.c.b16 %v584, %v580
    %v925 = vpack.c.b16 %v585, %v581
    %v926 = vpack.c.b16 %v586, %v582
    %v927 = vpack.c.b16 %v587, %v583
    %v928 = vpack.c.b16 %v592, %v588
    %v929 = vpack.c.b16 %v593, %v589
    %v930 = vpack.c.b16 %v594, %v590
    %v931 = vpack.c.b16 %v595, %v591
    %v932 = vpack.c.b16 %v600, %v596
    %v933 = vpack.c.b16 %v601, %v597
    %v934 = vpack.c.b16 %v602, %v598
    %v935 = vpack.c.b16 %v603, %v599
    %v936 = vpack.c.b16 %v608, %v604
    %v937 = vpack.c.b16 %v609, %v605
    %v938 = vpack.c.b16 %v610, %v606
    %v939 = vpack.c.b16 %v611, %v607
    %v940 = vpack.c.b16 %v616, %v612
    %v941 = vpack.c.b16 %v617, %v613
    %v942 = vpack.c.b16 %v618, %v614
    %v943 = vpack.c.b16 %v619, %v615
    %v944 = vpack.c.b16 %v624, %v620
    %v945 = vpack.c.b16 %v625, %v621
    %v946 = vpack.c.b16 %v626, %v622
    %v947 = vpack.c.b16 %v627, %v623
    %v948 = vpack.c.b16 %v632, %v628
    %v949 = vpack.c.b16 %v633, %v629
    %v950 = vpack.c.b16 %v634, %v630
    %v951 = vpack.c.b16 %v635, %v631
    %v952 = vpack.c.b16 %v640, %v636
    %v953 = vpack.c.b16 %v641, %v637
    %v954 = vpack.c.b16 %v642, %v638
    %v955 = vpack.c.b16 %v643, %v639
    %v956 = vpack.c.b16 %v648, %v644
    %v957 = vpack.c.b16 %v649, %v645
    %v958 = vpack.c.b16 %v650, %v646
    %v959 = vpack.c.b16 %v651, %v647
    %v960 = vpack.c.b16 %v656, %v652
    %v961 = vpack.c.b16 %v657, %v653
    %v962 = vpack.c.b16 %v658, %v654
    %v963 = vpack.c.b16 %v659, %v655
    %v964 = vpack.c.b16 %v664, %v660
    %v965 = vpack.c.b16 %v665, %v661
    %v966 = vpack.c.b16 %v666, %v662
    %v967 = vpack.c.b16 %v667, %v663
    %v968 = vpack.c.b16 %v672, %v668
    %v969 = vpack.c.b16 %v673, %v669
    %v970 = vpack.c.b16 %v674, %v670
    %v971 = vpack.c.b16 %v675, %v671
    %v972 = vpack.c.b16 %v680, %v676
    %v973 = vpack.c.b16 %v681, %v677
    %v974 = vpack.c.b16 %v682, %v678
    %v975 = vpack.c.b16 %v683, %v679
    %v976 = vpack.c.b16 %v688, %v684
    %v977 = vpack.c.b16 %v689, %v685
    %v978 = vpack.c.b16 %v690, %v686
    %v979 = vpack.c.b16 %v691, %v687
    %v980 = vpack.c.b16 %v696, %v692
    %v981 = vpack.c.b16 %v697, %v693
    %v982 = vpack.c.b16 %v698, %v694
    %v983 = vpack.c.b16 %v699, %v695
    %v984 = vpack.c.b16 %v704, %v700
    %v985 = vpack.c.b16 %v705, %v701
    %v986 = vpack.c.b16 %v706, %v702
    %v987 = vpack.c.b16 %v707, %v703
    %v988 = vpack.c.b16 %v712, %v708
    %v989 = vpack.c.b16 %v713, %v709
    %v990 = vpack.c.b16 %v714, %v710
    %v991 = vpack.c.b16 %v715, %v711
    %v992 = vpack.c.b16 %v720, %v716
    %v993 = vpack.c.b16 %v721, %v717
    %v994 = vpack.c.b16 %v722, %v718
    %v995 = vpack.c.b16 %v723, %v719
    %v996 = vpack.c.b16 %v728, %v724
    %v997 = vpack.c.b16 %v729, %v725
    %v998 = vpack.c.b16 %v730, %v726
    %v999 = vpack.c.b16 %v731, %v727
    %v1000 = vpack.c.b16 %v736, %v732
    %v1001 = vpack.c.b16 %v737, %v733
    %v1002 = vpack.c.b16 %v738, %v734
    %v1003 = vpack.c.b16 %v739, %v735
    %v1004 = vpack.c.b16 %v744, %v740
    %v1005 = vpack.c.b16 %v745, %v741
    %v1006 = vpack.c.b16 %v746, %v742
    %v1007 = vpack.c.b16 %v747, %v743
    %v1008 = vpack.c.b16 %v752, %v748
    %v1009 = vpack.c.b16 %v753, %v749
    %v1010 = vpack.c.b16 %v754, %v750
    %v1011 = vpack.c.b16 %v755, %v751
    %v1012 = vpack.c.b16 %v760, %v756
    %v1013 = vpack.c.b16 %v761, %v757
    %v1014 = vpack.c.b16 %v762, %v758
    %v1015 = vpack.c.b16 %v763, %v759
    %v1016 = vpack.c.b16 %v768, %v764
    %v1017 = vpack.c.b16 %v769, %v765
    %v1018 = vpack.c.b16 %v770, %v766
    %v1019 = vpack.c.b16 %v771, %v767
    %v1020 = vpack.c.b16 %v776, %v772
    %v1021 = vpack.c.b16 %v777, %v773
    %v1022 = vpack.c.b16 %v778, %v774
    %v1023 = vpack.c.b16 %v779, %v775
    %v1024 = vpack.c.b16 %v784, %v780
    %v1025 = vpack.c.b16 %v785, %v781
    %v1026 = vpack.c.b16 %v786, %v782
    %v1027 = vpack.c.b16 %v787, %v783
    %v1028 = vpack.c.b16 %v792, %v788
    %v1029 = vpack.c.b16 %v793, %v789
    %v1030 = vpack.c.b16 %v794, %v790
    %v1031 = vpack.c.b16 %v795, %v791
    %v1032 = vpack.c.b16 %v800, %v796
    %v1033 = vpack.c.b16 %v801, %v797
    %v1034 = vpack.c.b16 %v802, %v798
    %v1035 = vpack.c.b16 %v803, %v799
    %v1036 = vpack.c.b16 %v808, %v804
    %v1037 = vpack.c.b16 %v809, %v805
    %v1038 = vpack.c.b16 %v810, %v806
    %v1039 = vpack.c.b16 %v811, %v807
    %v1040 = vpack.c.b16 %v816, %v812
    %v1041 = vpack.c.b16 %v817, %v813
    %v1042 = vpack.c.b16 %v818, %v814
    %v1043 = vpack.c.b16 %v819, %v815
    %v1044 = vpack.c.b16 %v824, %v820
    %v1045 = vpack.c.b16 %v825, %v821
    %v1046 = vpack.c.b16 %v826, %v822
    %v1047 = vpack.c.b16 %v827, %v823
    %v1048 = vpack.c.b16 %v832, %v828
    %v1049 = vpack.c.b16 %v833, %v829
    %v1050 = vpack.c.b16 %v834, %v830
    %v1051 = vpack.c.b16 %v835, %v831
    %v1052 = vpack.c.b16 %v840, %v836
    %v1053 = vpack.c.b16 %v841, %v837
    %v1054 = vpack.c.b16 %v842, %v838
    %v1055 = vpack.c.b16 %v843, %v839
    %v1056 = vpack.c.b16 %v848, %v844
    %v1057 = vpack.c.b16 %v849, %v845
    %v1058 = vpack.c.b16 %v850, %v846
    %v1059 = vpack.c.b16 %v851, %v847
    %v1060 = vpack.c.b16 %v856, %v852
    %v1061 = vpack.c.b16 %v857, %v853
    %v1062 = vpack.c.b16 %v858, %v854
    %v1063 = vpack.c.b16 %v859, %v855
    %v1064 = vpack.c.b16 %v864, %v860
    %v1065 = vpack.c.b16 %v865, %v861
    %v1066 = vpack.c.b16 %v866, %v862
    %v1067 = vpack.c.b16 %v867, %v863
    %v1068 = vpack.c.b16 %v872, %v868
    %v1069 = vpack.c.b16 %v873, %v869
    %v1070 = vpack.c.b16 %v874, %v870
    %v1071 = vpack.c.b16 %v875, %v871
    %v1072 = vpack.c.b16 %v880, %v876
    %v1073 = vpack.c.b16 %v881, %v877
    %v1074 = vpack.c.b16 %v882, %v878
    %v1075 = vpack.c.b16 %v883, %v879
    %1268 = vmatpush.bf16.msra.mxu0 %v912
    %1269 = vmatpush.bf16.msra.mxu0 %v908
    %1270 = vmatpush.bf16.msra.mxu0 %v904
    %1271 = vmatpush.bf16.msra.mxu0 %v900
    %1272 = vmatpush.bf16.msra.mxu0 %v896
    %1273 = vmatpush.bf16.msra.mxu0 %v892
    %1274 = vmatpush.bf16.msra.mxu0 %v888
    %1275 = vmatpush.bf16.msra.mxu0 %v884
    %1276 = vmatmul.bf16.gmra.mxu0 %v296
    %v1277 = vpop.f32.mrf.mxu0
    %v1278 = vadd.f32 %v279, %v1277
    %v1279 = vpop.f32.mrf.mxu0
    %1280 = vdwg.mxu0
    %1281 = vmatpush.bf16.msra.mxu0 %v944
    %1282 = vmatpush.bf16.msra.mxu0 %v940
    %1283 = vmatpush.bf16.msra.mxu0 %v936
    %1284 = vmatpush.bf16.msra.mxu0 %v932
    %1285 = vmatpush.bf16.msra.mxu0 %v928
    %1286 = vmatpush.bf16.msra.mxu0 %v924
    %1287 = vmatpush.bf16.msra.mxu0 %v920
    %1288 = vmatpush.bf16.msra.mxu0 %v916
    %1289 = vmatmul.bf16.gmra.mxu0 %v297
    %v1290 = vpop.f32.mrf.mxu0
    %v1291 = vadd.f32 %v1278, %v1290
    %v1292 = vpop.f32.mrf.mxu0
    %1293 = vdwg.mxu0
    %1294 = vmatpush.bf16.msra.mxu0 %v976
    %1295 = vmatpush.bf16.msra.mxu0 %v972
    %1296 = vmatpush.bf16.msra.mxu0 %v968
    %1297 = vmatpush.bf16.msra.mxu0 %v964
    %1298 = vmatpush.bf16.msra.mxu0 %v960
    %1299 = vmatpush.bf16.msra.mxu0 %v956
    %1300 = vmatpush.bf16.msra.mxu0 %v952
    %1301 = vmatpush.bf16.msra.mxu0 %v948
    %1302 = vmatmul.bf16.gmra.mxu0 %v298
    %v1303 = vpop.f32.mrf.mxu0
    %v1304 = vadd.f32 %v1291, %v1303
    %v1305 = vpop.f32.mrf.mxu0
    %1306 = vdwg.mxu0
    %1307 = vmatpush.bf16.msra.mxu0 %v1008
    %1308 = vmatpush.bf16.msra.mxu0 %v1004
    %1309 = vmatpush.bf16.msra.mxu0 %v1000
    %1310 = vmatpush.bf16.msra.mxu0 %v996
    %1311 = vmatpush.bf16.msra.mxu0 %v992
    %1312 = vmatpush.bf16.msra.mxu0 %v988
    %1313 = vmatpush.bf16.msra.mxu0 %v984
    %1314 = vmatpush.bf16.msra.mxu0 %v980
    %1315 = vmatmul.bf16.gmra.mxu0 %v299
    %v1316 = vpop.f32.mrf.mxu0
    %v1317 = vadd.f32 %v1304, %v1316
    %v1318 = vpop.f32.mrf.mxu0
    %1319 = vdwg.mxu0
    %1320 = vmatpush.bf16.msra.mxu0 %v1040
    %1321 = vmatpush.bf16.msra.mxu0 %v1036
    %1322 = vmatpush.bf16.msra.mxu0 %v1032
    %1323 = vmatpush.bf16.msra.mxu0 %v1028
    %1324 = vmatpush.bf16.msra.mxu0 %v1024
    %1325 = vmatpush.bf16.msra.mxu0 %v1020
    %1326 = vmatpush.bf16.msra.mxu0 %v1016
    %1327 = vmatpush.bf16.msra.mxu0 %v1012
    %1328 = vmatmul.bf16.gmra.mxu0 %v300
    %v1329 = vpop.f32.mrf.mxu0
    %v1330 = vadd.f32 %v1317, %v1329
    %v1331 = vpop.f32.mrf.mxu0
    %1332 = vdwg.mxu0
    %1333 = vmatpush.bf16.msra.mxu0 %v1072
    %1334 = vmatpush.bf16.msra.mxu0 %v1068
    %1335 = vmatpush.bf16.msra.mxu0 %v1064
    %1336 = vmatpush.bf16.msra.mxu0 %v1060
    %1337 = vmatpush.bf16.msra.mxu0 %v1056
    %1338 = vmatpush.bf16.msra.mxu0 %v1052
    %1339 = vmatpush.bf16.msra.mxu0 %v1048
    %1340 = vmatpush.bf16.msra.mxu0 %v1044
    %1341 = vmatmul.bf16.gmra.mxu0 %v301
    %v1342 = vpop.f32.mrf.mxu0
    %v1343 = vadd.f32 %v1330, %v1342
    %v1344 = vpop.f32.mrf.mxu0
    %1345 = vdwg.mxu0
    %1346 = vmatpush.bf16.msra.mxu0 %v913
    %1347 = vmatpush.bf16.msra.mxu0 %v909
    %1348 = vmatpush.bf16.msra.mxu0 %v905
    %1349 = vmatpush.bf16.msra.mxu0 %v901
    %1350 = vmatpush.bf16.msra.mxu0 %v897
    %1351 = vmatpush.bf16.msra.mxu0 %v893
    %1352 = vmatpush.bf16.msra.mxu0 %v889
    %1353 = vmatpush.bf16.msra.mxu0 %v885
    %1354 = vmatmul.bf16.gmra.mxu0 %v296
    %v1355 = vpop.f32.mrf.mxu0
    %v1356 = vadd.f32 %v280, %v1355
    %v1357 = vpop.f32.mrf.mxu0
    %1358 = vdwg.mxu0
    %1359 = vmatpush.bf16.msra.mxu0 %v945
    %1360 = vmatpush.bf16.msra.mxu0 %v941
    %1361 = vmatpush.bf16.msra.mxu0 %v937
    %1362 = vmatpush.bf16.msra.mxu0 %v933
    %1363 = vmatpush.bf16.msra.mxu0 %v929
    %1364 = vmatpush.bf16.msra.mxu0 %v925
    %1365 = vmatpush.bf16.msra.mxu0 %v921
    %1366 = vmatpush.bf16.msra.mxu0 %v917
    %1367 = vmatmul.bf16.gmra.mxu0 %v297
    %v1368 = vpop.f32.mrf.mxu0
    %v1369 = vadd.f32 %v1356, %v1368
    %v1370 = vpop.f32.mrf.mxu0
    %1371 = vdwg.mxu0
    %1372 = vmatpush.bf16.msra.mxu0 %v977
    %1373 = vmatpush.bf16.msra.mxu0 %v973
    %1374 = vmatpush.bf16.msra.mxu0 %v969
    %1375 = vmatpush.bf16.msra.mxu0 %v965
    %1376 = vmatpush.bf16.msra.mxu0 %v961
    %1377 = vmatpush.bf16.msra.mxu0 %v957
    %1378 = vmatpush.bf16.msra.mxu0 %v953
    %1379 = vmatpush.bf16.msra.mxu0 %v949
    %1380 = vmatmul.bf16.gmra.mxu0 %v298
    %v1381 = vpop.f32.mrf.mxu0
    %v1382 = vadd.f32 %v1369, %v1381
    %v1383 = vpop.f32.mrf.mxu0
    %1384 = vdwg.mxu0
    %1385 = vmatpush.bf16.msra.mxu0 %v1009
    %1386 = vmatpush.bf16.msra.mxu0 %v1005
    %1387 = vmatpush.bf16.msra.mxu0 %v1001
    %1388 = vmatpush.bf16.msra.mxu0 %v997
    %1389 = vmatpush.bf16.msra.mxu0 %v993
    %1390 = vmatpush.bf16.msra.mxu0 %v989
    %1391 = vmatpush.bf16.msra.mxu0 %v985
    %1392 = vmatpush.bf16.msra.mxu0 %v981
    %1393 = vmatmul.bf16.gmra.mxu0 %v299
    %v1394 = vpop.f32.mrf.mxu0
    %v1395 = vadd.f32 %v1382, %v1394
    %v1396 = vpop.f32.mrf.mxu0
    %1397 = vdwg.mxu0
    %1398 = vmatpush.bf16.msra.mxu0 %v1041
    %1399 = vmatpush.bf16.msra.mxu0 %v1037
    %1400 = vmatpush.bf16.msra.mxu0 %v1033
    %1401 = vmatpush.bf16.msra.mxu0 %v1029
    %1402 = vmatpush.bf16.msra.mxu0 %v1025
    %1403 = vmatpush.bf16.msra.mxu0 %v1021
    %1404 = vmatpush.bf16.msra.mxu0 %v1017
    %1405 = vmatpush.bf16.msra.mxu0 %v1013
    %1406 = vmatmul.bf16.gmra.mxu0 %v300
    %v1407 = vpop.f32.mrf.mxu0
    %v1408 = vadd.f32 %v1395, %v1407
    %v1409 = vpop.f32.mrf.mxu0
    %1410 = vdwg.mxu0
    %1411 = vmatpush.bf16.msra.mxu0 %v1073
    %1412 = vmatpush.bf16.msra.mxu0 %v1069
    %1413 = vmatpush.bf16.msra.mxu0 %v1065
    %1414 = vmatpush.bf16.msra.mxu0 %v1061
    %1415 = vmatpush.bf16.msra.mxu0 %v1057
    %1416 = vmatpush.bf16.msra.mxu0 %v1053
    %1417 = vmatpush.bf16.msra.mxu0 %v1049
    %1418 = vmatpush.bf16.msra.mxu0 %v1045
    %1419 = vmatmul.bf16.gmra.mxu0 %v301
    %v1420 = vpop.f32.mrf.mxu0
    %v1421 = vadd.f32 %v1408, %v1420
    %v1422 = vpop.f32.mrf.mxu0
    %1423 = vdwg.mxu0
    %1424 = vmatpush.bf16.msra.mxu0 %v914
    %1425 = vmatpush.bf16.msra.mxu0 %v910
    %1426 = vmatpush.bf16.msra.mxu0 %v906
    %1427 = vmatpush.bf16.msra.mxu0 %v902
    %1428 = vmatpush.bf16.msra.mxu0 %v898
    %1429 = vmatpush.bf16.msra.mxu0 %v894
    %1430 = vmatpush.bf16.msra.mxu0 %v890
    %1431 = vmatpush.bf16.msra.mxu0 %v886
    %1432 = vmatmul.bf16.gmra.mxu0 %v296
    %v1433 = vpop.f32.mrf.mxu0
    %v1434 = vadd.f32 %v281, %v1433
    %v1435 = vpop.f32.mrf.mxu0
    %1436 = vdwg.mxu0
    %1437 = vmatpush.bf16.msra.mxu0 %v946
    %1438 = vmatpush.bf16.msra.mxu0 %v942
    %1439 = vmatpush.bf16.msra.mxu0 %v938
    %1440 = vmatpush.bf16.msra.mxu0 %v934
    %1441 = vmatpush.bf16.msra.mxu0 %v930
    %1442 = vmatpush.bf16.msra.mxu0 %v926
    %1443 = vmatpush.bf16.msra.mxu0 %v922
    %1444 = vmatpush.bf16.msra.mxu0 %v918
    %1445 = vmatmul.bf16.gmra.mxu0 %v297
    %v1446 = vpop.f32.mrf.mxu0
    %v1447 = vadd.f32 %v1434, %v1446
    %v1448 = vpop.f32.mrf.mxu0
    %1449 = vdwg.mxu0
    %1450 = vmatpush.bf16.msra.mxu0 %v978
    %1451 = vmatpush.bf16.msra.mxu0 %v974
    %1452 = vmatpush.bf16.msra.mxu0 %v970
    %1453 = vmatpush.bf16.msra.mxu0 %v966
    %1454 = vmatpush.bf16.msra.mxu0 %v962
    %1455 = vmatpush.bf16.msra.mxu0 %v958
    %1456 = vmatpush.bf16.msra.mxu0 %v954
    %1457 = vmatpush.bf16.msra.mxu0 %v950
    %1458 = vmatmul.bf16.gmra.mxu0 %v298
    %v1459 = vpop.f32.mrf.mxu0
    %v1460 = vadd.f32 %v1447, %v1459
    %v1461 = vpop.f32.mrf.mxu0
    %1462 = vdwg.mxu0
    %1463 = vmatpush.bf16.msra.mxu0 %v1010
    %1464 = vmatpush.bf16.msra.mxu0 %v1006
    %1465 = vmatpush.bf16.msra.mxu0 %v1002
    %1466 = vmatpush.bf16.msra.mxu0 %v998
    %1467 = vmatpush.bf16.msra.mxu0 %v994
    %1468 = vmatpush.bf16.msra.mxu0 %v990
    %1469 = vmatpush.bf16.msra.mxu0 %v986
    %1470 = vmatpush.bf16.msra.mxu0 %v982
    %1471 = vmatmul.bf16.gmra.mxu0 %v299
    %v1472 = vpop.f32.mrf.mxu0
    %v1473 = vadd.f32 %v1460, %v1472
    %v1474 = vpop.f32.mrf.mxu0
    %1475 = vdwg.mxu0
    %1476 = vmatpush.bf16.msra.mxu0 %v1042
    %1477 = vmatpush.bf16.msra.mxu0 %v1038
    %1478 = vmatpush.bf16.msra.mxu0 %v1034
    %1479 = vmatpush.bf16.msra.mxu0 %v1030
    %1480 = vmatpush.bf16.msra.mxu0 %v1026
    %1481 = vmatpush.bf16.msra.mxu0 %v1022
    %1482 = vmatpush.bf16.msra.mxu0 %v1018
    %1483 = vmatpush.bf16.msra.mxu0 %v1014
    %1484 = vmatmul.bf16.gmra.mxu0 %v300
    %v1485 = vpop.f32.mrf.mxu0
    %v1486 = vadd.f32 %v1473, %v1485
    %v1487 = vpop.f32.mrf.mxu0
    %1488 = vdwg.mxu0
    %1489 = vmatpush.bf16.msra.mxu0 %v1074
    %1490 = vmatpush.bf16.msra.mxu0 %v1070
    %1491 = vmatpush.bf16.msra.mxu0 %v1066
    %1492 = vmatpush.bf16.msra.mxu0 %v1062
    %1493 = vmatpush.bf16.msra.mxu0 %v1058
    %1494 = vmatpush.bf16.msra.mxu0 %v1054
    %1495 = vmatpush.bf16.msra.mxu0 %v1050
    %1496 = vmatpush.bf16.msra.mxu0 %v1046
    %1497 = vmatmul.bf16.gmra.mxu0 %v301
    %v1498 = vpop.f32.mrf.mxu0
    %v1499 = vadd.f32 %v1486, %v1498
    %v1500 = vpop.f32.mrf.mxu0
    %1501 = vdwg.mxu0
    %1502 = vmatpush.bf16.msra.mxu0 %v915
    %1503 = vmatpush.bf16.msra.mxu0 %v911
    %1504 = vmatpush.bf16.msra.mxu0 %v907
    %1505 = vmatpush.bf16.msra.mxu0 %v903
    %1506 = vmatpush.bf16.msra.mxu0 %v899
    %1507 = vmatpush.bf16.msra.mxu0 %v895
    %1508 = vmatpush.bf16.msra.mxu0 %v891
    %1509 = vmatpush.bf16.msra.mxu0 %v887
    %1510 = vmatmul.bf16.gmra.mxu0 %v296
    %v1511 = vpop.f32.mrf.mxu0
    %v1512 = vadd.f32 %v282, %v1511
    %v1513 = vpop.f32.mrf.mxu0
    %1514 = vdwg.mxu0
    %1515 = vmatpush.bf16.msra.mxu0 %v947
    %1516 = vmatpush.bf16.msra.mxu0 %v943
    %1517 = vmatpush.bf16.msra.mxu0 %v939
    %1518 = vmatpush.bf16.msra.mxu0 %v935
    %1519 = vmatpush.bf16.msra.mxu0 %v931
    %1520 = vmatpush.bf16.msra.mxu0 %v927
    %1521 = vmatpush.bf16.msra.mxu0 %v923
    %1522 = vmatpush.bf16.msra.mxu0 %v919
    %1523 = vmatmul.bf16.gmra.mxu0 %v297
    %v1524 = vpop.f32.mrf.mxu0
    %v1525 = vadd.f32 %v1512, %v1524
    %v1526 = vpop.f32.mrf.mxu0
    %1527 = vdwg.mxu0
    %1528 = vmatpush.bf16.msra.mxu0 %v979
    %1529 = vmatpush.bf16.msra.mxu0 %v975
    %1530 = vmatpush.bf16.msra.mxu0 %v971
    %1531 = vmatpush.bf16.msra.mxu0 %v967
    %1532 = vmatpush.bf16.msra.mxu0 %v963
    %1533 = vmatpush.bf16.msra.mxu0 %v959
    %1534 = vmatpush.bf16.msra.mxu0 %v955
    %1535 = vmatpush.bf16.msra.mxu0 %v951
    %1536 = vmatmul.bf16.gmra.mxu0 %v298
    %v1537 = vpop.f32.mrf.mxu0
    %v1538 = vadd.f32 %v1525, %v1537
    %v1539 = vpop.f32.mrf.mxu0
    %1540 = vdwg.mxu0
    %1541 = vmatpush.bf16.msra.mxu0 %v1011
    %1542 = vmatpush.bf16.msra.mxu0 %v1007
    %1543 = vmatpush.bf16.msra.mxu0 %v1003
    %1544 = vmatpush.bf16.msra.mxu0 %v999
    %1545 = vmatpush.bf16.msra.mxu0 %v995
    %1546 = vmatpush.bf16.msra.mxu0 %v991
    %1547 = vmatpush.bf16.msra.mxu0 %v987
    %1548 = vmatpush.bf16.msra.mxu0 %v983
    %1549 = vmatmul.bf16.gmra.mxu0 %v299
    %v1550 = vpop.f32.mrf.mxu0
    %v1551 = vadd.f32 %v1538, %v1550
    %v1552 = vpop.f32.mrf.mxu0
    %1553 = vdwg.mxu0
    %1554 = vmatpush.bf16.msra.mxu0 %v1043
    %1555 = vmatpush.bf16.msra.mxu0 %v1039
    %1556 = vmatpush.bf16.msra.mxu0 %v1035
    %1557 = vmatpush.bf16.msra.mxu0 %v1031
    %1558 = vmatpush.bf16.msra.mxu0 %v1027
    %1559 = vmatpush.bf16.msra.mxu0 %v1023
    %1560 = vmatpush.bf16.msra.mxu0 %v1019
    %1561 = vmatpush.bf16.msra.mxu0 %v1015
    %1562 = vmatmul.bf16.gmra.mxu0 %v300
    %v1563 = vpop.f32.mrf.mxu0
    %v1564 = vadd.f32 %v1551, %v1563
    %v1565 = vpop.f32.mrf.mxu0
    %1566 = vdwg.mxu0
    %1567 = vmatpush.bf16.msra.mxu0 %v1075
    %1568 = vmatpush.bf16.msra.mxu0 %v1071
    %1569 = vmatpush.bf16.msra.mxu0 %v1067
    %1570 = vmatpush.bf16.msra.mxu0 %v1063
    %1571 = vmatpush.bf16.msra.mxu0 %v1059
    %1572 = vmatpush.bf16.msra.mxu0 %v1055
    %1573 = vmatpush.bf16.msra.mxu0 %v1051
    %1574 = vmatpush.bf16.msra.mxu0 %v1047
    %1575 = vmatmul.bf16.gmra.mxu0 %v301
    %v1576 = vpop.f32.mrf.mxu0
    %v1577 = vadd.f32 %v1564, %v1576
    %v1578 = vpop.f32.mrf.mxu0
    %1579 = vdwg.mxu0
    %v1580 = vmax.f32 %v1343, 0.0
    %v1581 = vmax.f32 %v1421, 0.0
    %v1582 = vmax.f32 %v1499, 0.0
    %v1583 = vmax.f32 %v1577, 0.0
    %v1584 = vld [vmem:[#allocation8] sm:$0xff]
    %v1585 = vld [vmem:[#allocation8 + $0x8] sm:$0xff]
    %v1586 = vld [vmem:[#allocation8 + $0x10] sm:$0xff]
    %v1587 = vld [vmem:[#allocation8 + $0x18] sm:$0xff]
    %v1588 = vmul.f32 %v1580, %v1584
    %v1589 = vmul.f32 %v1581, %v1585
    %v1590 = vmul.f32 %v1582, %v1586
    %v1591 = vmul.f32 %v1583, %v1587
    %v1592 = vld [vmem:[%s3] sm:$0xf]
    %v1594 = vperm.slane %v1592, 0
    %v1595 = vperm.slane %v1592, 1
    %v1596 = vperm.slane %v1592, 2
    %v1597 = vperm.slane %v1592, 3
    %v1602 = vmul.f32 %v1588, %v1594
    %v1603 = vmul.f32 %v1589, %v1595
    %v1604 = vmul.f32 %v1590, %v1596
    %v1605 = vmul.f32 %v1591, %v1597
    %v1606 = vadd.f32 %v1602, %v1603
    %v1607 = vadd.f32 %v1606, %v1604
    %v1608 = vadd.f32 %v1607, %v1605
    %1609 = vadd.xlane.f32.xlu0 %v1608
    %v1610 = vpop.xlane.xlu0 %1609
    %v1611 = vld [vmem:[#allocation2] sm:$0x1]
    %v1613 = vperm.slane %v1611, 0
    %v1615 = vadd.f32 %v1610, %v1613
    %vm1616 = vcmask 7168
    %1617 = vst.msk [vmem:[%s6] sm:$0xff] %vm1616, %v1615
    // Predicated region
    $region42: #{tpu_custom_call.1} parent=1 // pred_check
      _
    $region43: #{tpu_custom_call.1} parent=1 // pred_check_branch
      %1619 = sbr.rel (0) target = $region45
    $region44: #{tpu_custom_call.1} parent=1 // pred_region
      _
    $region45: #{tpu_custom_call.1} parent=1 // pred_fallthru
      _
    // Predicated region
    $region46: #{tpu_custom_call.1} parent=1 // pred_check
      _
    $region47: #{tpu_custom_call.1} parent=1 // pred_check_branch
      %1621 = sbr.rel (0) target = $region49
    $region48: #{tpu_custom_call.1} parent=1 // pred_region
      _
    $region49: #{tpu_custom_call.1} parent=1 // pred_fallthru
      _
    %1622 = vsyncpa [#allocation4], 1
    %1623 = vsyncpa [#allocation6], 1
    %1624 = vsyncpa [#allocation9], 1

</llo_original>
